<compile_context>
chip_gen: v6e
topology: v6e:2x2x1
jax: 0.10.0
libtpu: 0.0.40
codegen_flags: <defaults>
</compile_context>

<pallas_src>
import functools

import jax
import jax.numpy as jnp
from jax.experimental import pallas as pl
from jax.experimental.pallas import tpu as pltpu

_EPS = 1e-5          # nn.BatchNorm3d default eps
_LANE = 128          # TPU lane width; channel / contraction dims padded to this
_TILE_TARGET = 256   # target rows per grid tile


def _round_up(x, m):
    return (x + m - 1) // m * m


def _pick_tile(n, target=_TILE_TARGET):
    """Largest row tile that divides n, is a multiple of 8 and <= target."""
    if n <= target:
        return n
    for t in range(target, 7, -8):
        if n % t == 0:
            return t
    return n


def _cparams():
    return pltpu.CompilerParams(
        dimension_semantics=("parallel",),          # row tiles are independent
        vmem_limit_bytes=32 * 1024 * 1024,
    )


def _pad_last(a, to):
    pad = to - a.shape[-1]
    if pad:
        a = jnp.pad(a, [(0, 0)] * (a.ndim - 1) + [(0, pad)])
    return a


# --------------------------------------------------------------------------
# Pallas kernels
# --------------------------------------------------------------------------
def _matmul_stats_kernel(p_ref, w_ref, b_ref, pre_ref, stats_ref):
    """Folded-K conv tile: pre = p @ w + bias, plus per-tile BN partial sums.

    p_ref:     (TILE_N, K)  bf16   im2col patches (taps folded into K)
    w_ref:     (K, C)       bf16   conv weight (K = taps * Cin_pad)
    b_ref:     (1, C)       f32    conv bias
    pre_ref:   (TILE_N, C)  f32    pre-BN conv output tile
    stats_ref: (1, 2, C)    f32    row 0: sum, row 1: sum of squares (this tile)
    """
    acc = jnp.dot(p_ref[...], w_ref[...], preferred_element_type=jnp.float32)
    acc = acc + b_ref[...]
    pre_ref[...] = acc
    s = jnp.sum(acc, axis=0, keepdims=True)
    ss = jnp.sum(acc * acc, axis=0, keepdims=True)
    stats_ref[...] = jnp.concatenate([s, ss], axis=0)[None]


def _bn_scale_shift(stats_all, gamma, beta, inv_n):
    """Global per-channel BN scale/shift from per-tile (sum, sumsq) partials."""
    tot = jnp.sum(stats_all, axis=0)                     # (2, C)
    mean = tot[0:1, :] * inv_n                           # (1, C)
    var = jnp.maximum(tot[1:2, :] * inv_n - mean * mean, 0.0)
    scale = gamma * jax.lax.rsqrt(var + _EPS)
    shift = beta - mean * scale
    return scale, shift


def _bn_act_kernel(pre_ref, stats_ref, g_ref, be_ref, o_ref, *, inv_n, relu):
    """Normalize pass: y = BN(pre) (+ ReLU)."""
    scale, shift = _bn_scale_shift(stats_ref[...], g_ref[...], be_ref[...], inv_n)
    y = pre_ref[...] * scale + shift
    if relu:
        y = jnp.maximum(y, 0.0)
    o_ref[...] = y.astype(o_ref.dtype)


def _bn_add_relu_kernel(pre_ref, stats_ref, g_ref, be_ref, res_ref, o_ref, *, inv_n):
    """Identity-shortcut fused epilogue: relu(BN2(pre2) + x)."""
    scale, shift = _bn_scale_shift(stats_ref[...], g_ref[...], be_ref[...], inv_n)
    y = pre_ref[...] * scale + shift + res_ref[...].astype(jnp.float32)
    o_ref[...] = jnp.maximum(y, 0.0).astype(o_ref.dtype)


def _bn_bn_add_relu_kernel(pre2_ref, st2_ref, g2_ref, be2_ref,
                           psc_ref, stsc_ref, gsc_ref, besc_ref, o_ref, *, inv_n):
    """Projection-shortcut fused epilogue: relu(BN2(pre2) + BN_sc(pre_sc))."""
    s2, t2 = _bn_scale_shift(st2_ref[...], g2_ref[...], be2_ref[...], inv_n)
    ssc, tsc = _bn_scale_shift(stsc_ref[...], gsc_ref[...], besc_ref[...], inv_n)
    y = (pre2_ref[...] * s2 + t2) + (psc_ref[...] * ssc + tsc)
    o_ref[...] = jnp.maximum(y, 0.0).astype(o_ref.dtype)


# --------------------------------------------------------------------------
# Host-side pallas_call wrappers
# --------------------------------------------------------------------------
def _matmul_stats(p, w, b, tile_n):
    """Tiled (N,K)@(K,C)+bias with per-tile BN sum/sumsq outputs."""
    n, k = p.shape
    c = w.shape[1]
    t = n // tile_n
    cost = pl.CostEstimate(
        flops=2 * n * k * c,
        transcendentals=0,
        bytes_accessed=(n * k * p.dtype.itemsize + k * c * w.dtype.itemsize
                        + n * c * 4 + t * 2 * c * 4))
    pre, stats = pl.pallas_call(
        _matmul_stats_kernel,
        grid=(t,),
        in_specs=[
            pl.BlockSpec((tile_n, k), lambda i: (i, 0)),
            pl.BlockSpec((k, c), lambda i: (0, 0)),
            pl.BlockSpec((1, c), lambda i: (0, 0)),
        ],
        out_specs=[
            pl.BlockSpec((tile_n, c), lambda i: (i, 0)),
            pl.BlockSpec((1, 2, c), lambda i: (i, 0, 0)),
        ],
        out_shape=[
            jax.ShapeDtypeStruct((n, c), jnp.float32),
            jax.ShapeDtypeStruct((t, 2, c), jnp.float32),
        ],
        compiler_params=_cparams(),
        cost_estimate=cost,
    )(p, w, b)
    return pre, stats


def _bn_act(pre, stats, gamma, beta, tile_n, *, relu, out_dtype):
    n, c = pre.shape
    t = n // tile_n
    ts = stats.shape[0]
    cost = pl.CostEstimate(flops=4 * n * c, transcendentals=c,
                           bytes_accessed=2 * n * c * 4)
    return pl.pallas_call(
        functools.partial(_bn_act_kernel, inv_n=1.0 / n, relu=relu),
        grid=(t,),
        in_specs=[
            pl.BlockSpec((tile_n, c), lambda i: (i, 0)),
            pl.BlockSpec((ts, 2, c), lambda i: (0, 0, 0)),
            pl.BlockSpec((1, c), lambda i: (0, 0)),
            pl.BlockSpec((1, c), lambda i: (0, 0)),
        ],
        out_specs=pl.BlockSpec((tile_n, c), lambda i: (i, 0)),
        out_shape=jax.ShapeDtypeStruct((n, c), out_dtype),
        compiler_params=_cparams(),
        cost_estimate=cost,
    )(pre, stats, gamma, beta)


def _bn_add_relu(pre, stats, gamma, beta, res, tile_n):
    n, c = pre.shape
    t = n // tile_n
    ts = stats.shape[0]
    cost = pl.CostEstimate(flops=5 * n * c, transcendentals=c,
                           bytes_accessed=3 * n * c * 4)
    return pl.pallas_call(
        functools.partial(_bn_add_relu_kernel, inv_n=1.0 / n),
        grid=(t,),
        in_specs=[
            pl.BlockSpec((tile_n, c), lambda i: (i, 0)),
            pl.BlockSpec((ts, 2, c), lambda i: (0, 0, 0)),
            pl.BlockSpec((1, c), lambda i: (0, 0)),
            pl.BlockSpec((1, c), lambda i: (0, 0)),
            pl.BlockSpec((tile_n, c), lambda i: (i, 0)),
        ],
        out_specs=pl.BlockSpec((tile_n, c), lambda i: (i, 0)),
        out_shape=jax.ShapeDtypeStruct((n, c), jnp.float32),
        compiler_params=_cparams(),
        cost_estimate=cost,
    )(pre, stats, gamma, beta, res)


def _bn_bn_add_relu(pre2, st2, g2, be2, presc, stsc, gsc, besc, tile_n):
    n, c = pre2.shape
    t = n // tile_n
    ts = st2.shape[0]
    cost = pl.CostEstimate(flops=8 * n * c, transcendentals=2 * c,
                           bytes_accessed=3 * n * c * 4)
    return pl.pallas_call(
        functools.partial(_bn_bn_add_relu_kernel, inv_n=1.0 / n),
        grid=(t,),
        in_specs=[
            pl.BlockSpec((tile_n, c), lambda i: (i, 0)),
            pl.BlockSpec((ts, 2, c), lambda i: (0, 0, 0)),
            pl.BlockSpec((1, c), lambda i: (0, 0)),
            pl.BlockSpec((1, c), lambda i: (0, 0)),
            pl.BlockSpec((tile_n, c), lambda i: (i, 0)),
            pl.BlockSpec((ts, 2, c), lambda i: (0, 0, 0)),
            pl.BlockSpec((1, c), lambda i: (0, 0)),
            pl.BlockSpec((1, c), lambda i: (0, 0)),
        ],
        out_specs=pl.BlockSpec((tile_n, c), lambda i: (i, 0)),
        out_shape=jax.ShapeDtypeStruct((n, c), jnp.float32),
        compiler_params=_cparams(),
        cost_estimate=cost,
    )(pre2, st2, g2, be2, presc, stsc, gsc, besc)


# --------------------------------------------------------------------------
# Host-side glue (layout plumbing only; all FLOPs run in the kernels above)
# --------------------------------------------------------------------------
def _im2col_3x3x3(x, stride):
    """Extract the 27 shifted views of the zero-padded NDHWC volume and fold
    them into the contraction dim: (N, 27*C), tap-major (kd, kh, kw, c)."""
    b, d, h, w, c = x.shape
    d_o = (d + 2 - 3) // stride + 1
    h_o = (h + 2 - 3) // stride + 1
    w_o = (w + 2 - 3) // stride + 1
    n = b * d_o * h_o * w_o
    xp = jnp.pad(x, ((0, 0), (1, 1), (1, 1), (1, 1), (0, 0)))
    cols = []
    for kd in range(3):
        for kh in range(3):
            for kw in range(3):
                sl = xp[:, kd:kd + (d_o - 1) * stride + 1:stride,
                           kh:kh + (h_o - 1) * stride + 1:stride,
                           kw:kw + (w_o - 1) * stride + 1:stride, :]
                cols.append(sl.reshape(n, c))
    patches = jnp.concatenate(cols, axis=1)   # (N, 27*C)
    return patches, (b, d_o, h_o, w_o)


def init_params(key, in_channels, out_channels, stride=1):
    """Deterministic synthetic parameters, repacked/padded for the kernels."""
    c_pad = _round_up(out_channels, _LANE)
    k1_pad = _round_up(27 * in_channels, _LANE)
    ksc_pad = _round_up(in_channels, _LANE)
    keys = jax.random.split(key, 6)

    def repack(w_oc_ic_kkk, cin_pad, cout_pad):
        # (Cout, Cin, 3,3,3) -> (27*cin_pad, cout_pad), K order (kd,kh,kw,cin)
        cout, cin = w_oc_ic_kkk.shape[:2]
        w = jnp.transpose(w_oc_ic_kkk, (2, 3, 4, 1, 0))        # (3,3,3,Cin,Cout)
        w = jnp.pad(w, ((0, 0), (0, 0), (0, 0),
                        (0, cin_pad - cin), (0, cout_pad - cout)))
        return w.reshape(27 * cin_pad, cout_pad)

    def pad_c(v):
        return jnp.pad(v, (0, c_pad - out_channels)).reshape(1, c_pad)

    w1 = 0.1 * jax.random.normal(keys[0], (out_channels, in_channels, 3, 3, 3), jnp.float32)
    w2 = 0.1 * jax.random.normal(keys[1], (out_channels, out_channels, 3, 3, 3), jnp.float32)

    w1p = repack(w1, in_channels, c_pad)                        # (27*cin, c_pad)
    w1p = jnp.pad(w1p, ((0, k1_pad - 27 * in_channels), (0, 0)))  # lane-align K

    params = {
        "w1": w1p.astype(jnp.bfloat16),
        "b1": pad_c(0.1 * jax.random.normal(keys[2], (out_channels,), jnp.float32)),
        "g1": pad_c(jnp.ones((out_channels,), jnp.float32)),
        "be1": pad_c(jnp.zeros((out_channels,), jnp.float32)),
        # conv2 consumes the channel-padded out1, so its K is 27*c_pad
        "w2": repack(w2, c_pad, c_pad).astype(jnp.bfloat16),
        "b2": pad_c(0.1 * jax.random.normal(keys[3], (out_channels,), jnp.float32)),
        "g2": pad_c(jnp.ones((out_channels,), jnp.float32)),
        "be2": pad_c(jnp.zeros((out_channels,), jnp.float32)),
        "wsc": None, "bsc": None, "gsc": None, "besc": None,
        "cfg": {"c_in": in_channels, "c_out": out_channels, "c_pad": c_pad},
    }
    if stride != 1 or in_channels != out_channels:
        wsc = 0.1 * jax.random.normal(keys[4], (out_channels, in_channels, 1, 1, 1), jnp.float32)
        wscp = jnp.transpose(wsc[:, :, 0, 0, 0], (1, 0))        # (Cin, Cout)
        wscp = jnp.pad(wscp, ((0, ksc_pad - in_channels), (0, c_pad - out_channels)))
        params["wsc"] = wscp.astype(jnp.bfloat16)
        params["bsc"] = pad_c(0.1 * jax.random.normal(keys[5], (out_channels,), jnp.float32))
        params["gsc"] = pad_c(jnp.ones((out_channels,), jnp.float32))
        params["besc"] = pad_c(jnp.zeros((out_channels,), jnp.float32))
    return params


def basic_block_3d(x_ncdhw, params, stride=1):
    """Forward pass of BasicBlock3D. Input/output in PyTorch NCDHW layout."""
    cfg = params["cfg"]
    c_out, c_pad = cfg["c_out"], cfg["c_pad"]

    x = jnp.transpose(x_ncdhw, (0, 2, 3, 4, 1))                 # -> NDHWC (f32)
    b, d, h, w, c_in = x.shape

    # ---- conv1 + bn1 + relu ----------------------------------------------
    p1, (_, d_o, h_o, w_o) = _im2col_3x3x3(x, stride)
    n = p1.shape[0]
    p1 = _pad_last(p1, params["w1"].shape[0]).astype(jnp.bfloat16)
    tile = _pick_tile(n)
    pre1, st1 = _matmul_stats(p1, params["w1"], params["b1"], tile)
    out1 = _bn_act(pre1, st1, params["g1"], params["be1"], tile,
                   relu=True, out_dtype=jnp.bfloat16)           # (N, c_pad) bf16
    out1 = out1.reshape(b, d_o, h_o, w_o, c_pad)

    # ---- conv2 + bn2 (pre-activation) -------------------------------------
    p2, _ = _im2col_3x3x3(out1, 1)                              # K = 27*c_pad
    pre2, st2 = _matmul_stats(p2, params["w2"], params["b2"], tile)

    # ---- shortcut + residual add + relu (fused epilogue) -------------------
    if params["wsc"] is not None:
        xs = x[:, :(d_o - 1) * stride + 1:stride,
                  :(h_o - 1) * stride + 1:stride,
                  :(w_o - 1) * stride + 1:stride, :]
        x_flat = _pad_last(xs.reshape(n, c_in),
                           params["wsc"].shape[0]).astype(jnp.bfloat16)
        presc, stsc = _matmul_stats(x_flat, params["wsc"], params["bsc"], tile)
        out = _bn_bn_add_relu(pre2, st2, params["g2"], params["be2"],
                              presc, stsc, params["gsc"], params["besc"], tile)
    else:
        x_flat = _pad_last(x.reshape(n, c_in), c_pad)           # f32 residual
        out = _bn_add_relu(pre2, st2, params["g2"], params["be2"], x_flat, tile)

    out = out.reshape(b, d_o, h_o, w_o, c_pad)[..., :c_out]     # drop lane pad
    return jnp.transpose(out, (0, 4, 1, 2, 3))                  # -> NCDHW


if __name__ == "__main__":
    key = jax.random.PRNGKey(0)
    kx, kp, kp2 = jax.random.split(key, 3)

    B, D, H, W = 2, 8, 8, 8

    # Projection-shortcut configuration (in_channels != out_channels).
    in_c, out_c, stride = 4, 8, 1
    x = jax.random.normal(kx, (B, in_c, D, H, W), jnp.float32)
    params = init_params(kp, in_c, out_c, stride=stride)
    out = jax.block_until_ready(basic_block_3d(x, params, stride=stride))
    assert out.shape == (B, out_c, D, H, W), out.shape
    assert bool(jnp.all(out >= 0.0))          # final ReLU

    # Identity-shortcut configuration (in == out, stride == 1).
    params_id = init_params(kp2, out_c, out_c, stride=1)
    x2 = jax.random.normal(kx, (B, out_c, D, H, W), jnp.float32)
    out2 = jax.block_until_ready(basic_block_3d(x2, params_id, stride=1))
    assert out2.shape == (B, out_c, D, H, W), out2.shape
    assert bool(jnp.all(out2 >= 0.0))

    print("KERNEL_OK")
</pallas_src>

<mosaic_0001>
module attributes {stable_mosaic.version = 11 : i64} {
  func.func @_matmul_stats_kernel(%arg0: i32, %arg1: memref<256x128xbf16, #tpu.memory_space<vmem>>, %arg2: memref<128x128xbf16, #tpu.memory_space<vmem>>, %arg3: memref<1x128xf32, #tpu.memory_space<vmem>>, %arg4: memref<256x128xf32, #tpu.memory_space<vmem>>, %arg5: memref<1x2x128xf32, #tpu.memory_space<vmem>>) attributes {dimension_semantics = [#tpu.dimension_semantics<parallel>], iteration_bounds = array<i64: 4>, scalar_prefetch = 0 : i64, scratch_operands = 0 : i64, tpu.core_type = #tpu.core_type<tc>, window_params = [{transform_indices = @transform_0, window_bounds = array<i64: 256, 128>}, {pipeline_mode = #tpu.pipeline_mode<synchronous>, transform_indices = @transform_1, window_bounds = array<i64: 128, 128>}, {pipeline_mode = #tpu.pipeline_mode<synchronous>, transform_indices = @transform_2, window_bounds = array<i64: 1, 128>}, {transform_indices = @transform_3, window_bounds = array<i64: 256, 128>}, {transform_indices = @transform_4, window_bounds = array<i64: 1, 2, 128>}]} {
    %c0 = arith.constant 0 : index
    %c0_0 = arith.constant 0 : index
    %0 = vector.load %arg1[%c0, %c0_0] : memref<256x128xbf16, #tpu.memory_space<vmem>>, vector<256x128xbf16>
    %c0_1 = arith.constant 0 : index
    %c0_2 = arith.constant 0 : index
    %1 = vector.load %arg2[%c0_1, %c0_2] : memref<128x128xbf16, #tpu.memory_space<vmem>>, vector<128x128xbf16>
    %cst = arith.constant dense<0.000000e+00> : vector<256x128xf32>
    %2 = tpu.matmul %0, %1, %cst {dimension_numbers = #tpu.dot_dimension_numbers<[1], [0], [0], [1], [0, 0, 1, 1], [], []>} : vector<256x128xbf16>, vector<128x128xbf16>, vector<256x128xf32> -> vector<256x128xf32>
    %c0_3 = arith.constant 0 : index
    %c0_4 = arith.constant 0 : index
    %3 = vector.load %arg3[%c0_3, %c0_4] : memref<1x128xf32, #tpu.memory_space<vmem>>, vector<1x128xf32>
    %4 = vector.broadcast %3 : vector<1x128xf32> to vector<256x128xf32>
    %5 = arith.addf %2, %4 : vector<256x128xf32>
    %c0_5 = arith.constant 0 : index
    %c0_6 = arith.constant 0 : index
    %6 = vector.load %arg4[%c0_5, %c0_6] : memref<256x128xf32, #tpu.memory_space<vmem>>, vector<256x128xf32>
    tpu.vector_store %arg4[%c0_5, %c0_6], %5 {strides = array<i32>} : memref<256x128xf32, #tpu.memory_space<vmem>>, vector<256x128xf32>,
    %cst_7 = arith.constant dense<0.000000e+00> : vector<128xf32>
    %7 = vector.multi_reduction <add>, %5, %cst_7 [0] : vector<256x128xf32> to vector<128xf32>
    %8 = vector.shape_cast %7 : vector<128xf32> to vector<1x128xf32>
    %9 = arith.mulf %5, %5 : vector<256x128xf32>
    %cst_8 = arith.constant dense<0.000000e+00> : vector<128xf32>
    %10 = vector.multi_reduction <add>, %9, %cst_8 [0] : vector<256x128xf32> to vector<128xf32>
    %11 = vector.shape_cast %10 : vector<128xf32> to vector<1x128xf32>
    %12 = tpu.concatenate %8, %11 in 0 : vector<1x128xf32>, vector<1x128xf32> -> vector<2x128xf32>
    %13 = vector.shape_cast %12 : vector<2x128xf32> to vector<1x2x128xf32>
    %c0_9 = arith.constant 0 : index
    %c0_10 = arith.constant 0 : index
    %c0_11 = arith.constant 0 : index
    %14 = vector.load %arg5[%c0_9, %c0_10, %c0_11] : memref<1x2x128xf32, #tpu.memory_space<vmem>>, vector<1x2x128xf32>
    tpu.vector_store %arg5[%c0_9, %c0_10, %c0_11], %13 {strides = array<i32>} : memref<1x2x128xf32, #tpu.memory_space<vmem>>, vector<1x2x128xf32>,
    return
  }
  func.func @transform_0(%arg0: i32) -> (i32, i32) {
    %c0_i32 = arith.constant 0 : i32
    %c0_i32_0 = arith.constant 0 : i32
    return %arg0, %c0_i32 : i32, i32
  }
  func.func @transform_1(%arg0: i32) -> (i32, i32) {
    %c0_i32 = arith.constant 0 : i32
    %c0_i32_0 = arith.constant 0 : i32
    %c0_i32_1 = arith.constant 0 : i32
    return %c0_i32, %c0_i32_0 : i32, i32
  }
  func.func @transform_2(%arg0: i32) -> (i32, i32) {
    %c0_i32 = arith.constant 0 : i32
    %c0_i32_0 = arith.constant 0 : i32
    %c0_i32_1 = arith.constant 0 : i32
    return %c0_i32, %c0_i32_0 : i32, i32
  }
  func.func @transform_3(%arg0: i32) -> (i32, i32) {
    %c0_i32 = arith.constant 0 : i32
    %c0_i32_0 = arith.constant 0 : i32
    return %arg0, %c0_i32 : i32, i32
  }
  func.func @transform_4(%arg0: i32) -> (i32, i32, i32) {
    %c0_i32 = arith.constant 0 : i32
    %c0_i32_0 = arith.constant 0 : i32
    %c0_i32_1 = arith.constant 0 : i32
    return %arg0, %c0_i32, %c0_i32_0 : i32, i32, i32
  }
}

</mosaic_0001>

<llo_original>
// kernel: tpu_custom_call.1
$region0: #{tpu_custom_call.1}
  #allocation0 [shape = 'u32[]', space=smem, size = 0x4, offset = 0x4, fixed_abs, tag = 'smem constant byte address 0x4 - core index']
  #allocation1 [shape = 'u32[144,128]{1,0:T(1,128)}', space=vmem, size = 0x12000, scoped, tag = 'internal scratch']
  %s0 = inlined_call_operand.hbm [shape: bf16[1024,128], index: 0, kind: input, shape index: {}]
  %s1 = inlined_call_operand.hbm [shape: bf16[128,128], index: 1, kind: input, shape index: {}]
  %s2 = inlined_call_operand.vmem [shape: f32[1,128], index: 2, kind: input, shape index: {}]
  %s3 = inlined_call_operand.hbm [shape: f32[1024,128], index: 3, kind: output, shape index: {0}]
  %s4 = inlined_call_operand.hbm [shape: f32[4,2,128], index: 4, kind: output, shape index: {1}]
  %5 = xla_tuple %s3, %s4
  %s6 = sld [smem:[#allocation0]]
  $region61: #{tpu_custom_call.1} parent=0
    _
  %s8 = ssub.s32 1, %s6
  %s9 = scalar_select 0, %s8, %s6
  $region1: #{tpu_custom_call.1} parent=0
    #allocation2 [shape = 'u8[131072]{0}', space=vmem, size = 0x20000, scoped, tag = 'input window, operand 0']
    #allocation3 [shape = 's32[2]{0}', space=sflag, size = 0x8, scoped, tag = 'scoped memory for tpu_custom_call.1']
    #allocation4 [shape = 's32[2]{0}', space=sflag, size = 0x8, scoped, tag = 'scoped memory for tpu_custom_call.1']
    #allocation5 [shape = 'u8[32768]{0}', space=vmem, size = 0x8000, scoped, tag = 'input window, operand 1, single buffered']
    #allocation6 [shape = 's32[1]{0}', space=sflag, size = 0x4, scoped, tag = 'scoped memory for tpu_custom_call.1']
    #allocation7 [shape = 'u8[262144]{0}', space=vmem, size = 0x40000, scoped, tag = 'output window, operand 0']
    #allocation8 [shape = 'u8[2048]{0}', space=vmem, size = 0x800, scoped, tag = 'output window, operand 1']
    #allocation9 [shape = 's32[2]{0}', space=sflag, size = 0x8, scoped, tag = 'scoped memory for tpu_custom_call.1']
    %10 = vsyncpa [#allocation3], 0
    %s11 = scalar_lea.sflag [#allocation3], 1
    %12 = vsyncpa %s11, 0
    %13 = vsyncpa [#allocation6], 0
    %14 = vsyncpa [#allocation4], 0
    %s15 = scalar_lea.sflag [#allocation4], 1
    %16 = vsyncpa %s15, 0
    %17 = vsyncpa [#allocation9], 0
    %s18 = scalar_lea.sflag [#allocation9], 1
    %19 = vsyncpa %s18, 0
    loop: start=0, step=1, limit=6
    $region2: #{tpu_custom_call.1} parent=1 // loop_pre_header
      _
    $region3: #{tpu_custom_call.1} parent=1 // loop_header
      %s21 = sphi 0, %s25
      %p22 = scmp.ge.s32.totalorder %s21, 6
      %s31 = sphi 0, %s33
      %s34 = sphi 0, %s31
      %s35 = sphi 0, %s34
      %s51 = sphi 0, %s35
      %s55 = sphi 0, %s55
      %s57 = sphi 0, %s55
      %s58 = sphi 0, %s57
      %s72 = sphi 0, %s58
      %s76 = sphi 0, %s76
      %s78 = sphi 0, %s76
      %s79 = sphi 0, %s78
      %s93 = sphi 0, %s79
      %s99 = sphi 0, %s101
      %s102 = sphi 0, %s99
      %s103 = sphi 0, %s102
      %s119 = sphi 0, %s103
      %s125 = sphi 0, %s127
      %s128 = sphi 0, %s125
      %s129 = sphi 0, %s128
      %s145 = sphi 0, %s129
    $region4: #{tpu_custom_call.1} parent=1 // loop_header_branch
      %24 = sbr.rel (%p22) target = $region8
    $region5: #{tpu_custom_call.1} parent=1 // loop_body
      %s26 = ssub.s32 %s21, 1
      %s27 = ssub.s32 %s21, 2
      %s28 = sadd.s32 %s21, 1
      %s29 = ssub.s32 %s21, %s28
      %p30 = scmp.eq.s32.totalorder %s29, 0
      %s32 = sadd.s32 %s31, 1
      %s33 = scalar_select %p30, %s31, %s32
      %p36 = pneg %p30
      %p37 = scmp.eq.s32.totalorder %s21, 3
      %p38 = por %p36, %p37
      %p39 = scmp.ne.s32.totalorder %s31, %s34
      %p40 = scmp.eq.s32.totalorder %s21, 0
      %p41 = por %p39, %p40
      %p42 = scmp.ne.s32.totalorder %s31, %s34
      %p43 = scmp.eq.s32.totalorder %s26, 3
      %p44 = por %p42, %p43
      %p45 = scmp.ne.s32.totalorder %s34, %s35
      %p46 = scmp.eq.s32.totalorder %s26, 0
      %p47 = por %p45, %p46
      %p48 = scmp.ne.s32.totalorder %s34, %s35
      %p49 = scmp.eq.s32.totalorder %s27, 3
      %p50 = por %p48, %p49
      %p52 = scmp.ne.s32.totalorder %s35, %s51
      %p53 = scmp.eq.s32.totalorder %s27, 0
      %p54 = por %p52, %p53
      %s56 = sadd.s32 %s55, 1
      %p59 = scmp.eq.s32.totalorder %s21, 3
      %p60 = scmp.ne.s32.totalorder %s55, %s57
      %p61 = scmp.eq.s32.totalorder %s21, 0
      %p62 = por %p60, %p61
      %p63 = scmp.ne.s32.totalorder %s55, %s57
      %p64 = scmp.eq.s32.totalorder %s26, 3
      %p65 = por %p63, %p64
      %p66 = scmp.ne.s32.totalorder %s57, %s58
      %p67 = scmp.eq.s32.totalorder %s26, 0
      %p68 = por %p66, %p67
      %p69 = scmp.ne.s32.totalorder %s57, %s58
      %p70 = scmp.eq.s32.totalorder %s27, 3
      %p71 = por %p69, %p70
      %p73 = scmp.ne.s32.totalorder %s58, %s72
      %p74 = scmp.eq.s32.totalorder %s27, 0
      %p75 = por %p73, %p74
      %s77 = sadd.s32 %s76, 1
      %p80 = scmp.eq.s32.totalorder %s21, 3
      %p81 = scmp.ne.s32.totalorder %s76, %s78
      %p82 = scmp.eq.s32.totalorder %s21, 0
      %p83 = por %p81, %p82
      %p84 = scmp.ne.s32.totalorder %s76, %s78
      %p85 = scmp.eq.s32.totalorder %s26, 3
      %p86 = por %p84, %p85
      %p87 = scmp.ne.s32.totalorder %s78, %s79
      %p88 = scmp.eq.s32.totalorder %s26, 0
      %p89 = por %p87, %p88
      %p90 = scmp.ne.s32.totalorder %s78, %s79
      %p91 = scmp.eq.s32.totalorder %s27, 3
      %p92 = por %p90, %p91
      %p94 = scmp.ne.s32.totalorder %s79, %s93
      %p95 = scmp.eq.s32.totalorder %s27, 0
      %p96 = por %p94, %p95
      %s97 = ssub.s32 %s21, %s28
      %p98 = scmp.eq.s32.totalorder %s97, 0
      %s100 = sadd.s32 %s99, 1
      %s101 = scalar_select %p98, %s99, %s100
      %p104 = pneg %p98
      %p105 = scmp.eq.s32.totalorder %s21, 3
      %p106 = por %p104, %p105
      %p107 = scmp.ne.s32.totalorder %s99, %s102
      %p108 = scmp.eq.s32.totalorder %s21, 0
      %p109 = por %p107, %p108
      %p110 = scmp.ne.s32.totalorder %s99, %s102
      %p111 = scmp.eq.s32.totalorder %s26, 3
      %p112 = por %p110, %p111
      %p113 = scmp.ne.s32.totalorder %s102, %s103
      %p114 = scmp.eq.s32.totalorder %s26, 0
      %p115 = por %p113, %p114
      %p116 = scmp.ne.s32.totalorder %s102, %s103
      %p117 = scmp.eq.s32.totalorder %s27, 3
      %p118 = por %p116, %p117
      %p120 = scmp.ne.s32.totalorder %s103, %s119
      %p121 = scmp.eq.s32.totalorder %s27, 0
      %p122 = por %p120, %p121
      %s123 = ssub.s32 %s21, %s28
      %p124 = scmp.eq.s32.totalorder %s123, 0
      %s126 = sadd.s32 %s125, 1
      %s127 = scalar_select %p124, %s125, %s126
      %p130 = pneg %p124
      %p131 = scmp.eq.s32.totalorder %s21, 3
      %p132 = por %p130, %p131
      %p133 = scmp.ne.s32.totalorder %s125, %s128
      %p134 = scmp.eq.s32.totalorder %s21, 0
      %p135 = por %p133, %p134
      %p136 = scmp.ne.s32.totalorder %s125, %s128
      %p137 = scmp.eq.s32.totalorder %s26, 3
      %p138 = por %p136, %p137
      %p139 = scmp.ne.s32.totalorder %s128, %s129
      %p140 = scmp.eq.s32.totalorder %s26, 0
      %p141 = por %p139, %p140
      %p142 = scmp.ne.s32.totalorder %s128, %s129
      %p143 = scmp.eq.s32.totalorder %s27, 3
      %p144 = por %p142, %p143
      %p146 = scmp.ne.s32.totalorder %s129, %s145
      %p147 = scmp.eq.s32.totalorder %s27, 0
      %p148 = por %p146, %p147
      %p149 = scmp.le.s32.totalorder 1, %s21
      %p150 = scmp.lt.s32.totalorder %s21, 5
      %p151 = pnand %p149, %p150
      %p152 = pneg %p151
      // Predicated region
      $region9: #{tpu_custom_call.1} parent=5 // pred_check
        _
      $region10: #{tpu_custom_call.1} parent=5 // pred_check_branch
        %154 = sbr.rel (%p151) target = $region12
      $region11: #{tpu_custom_call.1} parent=5 // pred_region
        %s155 = ssub.s32 %s21, 1
        // Predicated region
        $region13: #{tpu_custom_call.1} parent=11 // pred_check
          %p156 = pneg %p68
        $region14: #{tpu_custom_call.1} parent=11 // pred_check_branch
          %158 = sbr.rel (%p156) target = $region16
        $region15: #{tpu_custom_call.1} parent=11 // pred_region
          %s160 = ssub.s32 1024, 1024
          %161 = vsyncadd [#allocation6], %s160
          %s162 = sshll.u32 [#allocation5], 4
          %s163 = int_to_ptr.vmem [resolvable:$true] %s162
          %168 = dma.hbm_to_vmem [thread:$0]  %s1, 1024, %s163, [#allocation6], 64, 64, 4
        $region16: #{tpu_custom_call.1} parent=11 // pred_fallthru
          _
        // Predicated region
        $region17: #{tpu_custom_call.1} parent=11 // pred_check
          %p169 = pneg %p89
        $region18: #{tpu_custom_call.1} parent=11 // pred_check_branch
          %171 = sbr.rel (%p169) target = $region20
        $region19: #{tpu_custom_call.1} parent=11 // pred_region
          _
        $region20: #{tpu_custom_call.1} parent=11 // pred_fallthru
          _
      $region12: #{tpu_custom_call.1} parent=5 // pred_fallthru
        _
      %p172 = scmp.lt.s32.totalorder %s21, 4
      // Predicated region
      $region21: #{tpu_custom_call.1} parent=5 // pred_check
        %p173 = pneg %p172
      $region22: #{tpu_custom_call.1} parent=5 // pred_check_branch
        %175 = sbr.rel (%p173) target = $region24
      $region23: #{tpu_custom_call.1} parent=5 // pred_region
        // Predicated region
        $region25: #{tpu_custom_call.1} parent=23 // pred_check
          %p176 = pneg %p41
        $region26: #{tpu_custom_call.1} parent=23 // pred_check_branch
          %178 = sbr.rel (%p176) target = $region28
        $region27: #{tpu_custom_call.1} parent=23 // pred_region
          %s179 = sand.u32 %s31, 1
          %s180 = scalar_lea.sflag [#allocation3], %s179
          %s181 = sand.u32 %s31, 1
          %s182 = smul.addr %s181, 128
          %s183 = scalar_lea.vmem [#allocation2], %s182
          %s184 = smul.u32 32, %s21
          %s186 = ssub.s32 2048, 2048
          %187 = vsyncadd %s180, %s186
          %s188 = smul.addr %s184, 64
          %s189 = scalar_lea.hbm %s0, %s188
          %s190 = sshll.u32 %s183, 4
          %s191 = int_to_ptr.vmem [resolvable:$true] %s190
          %196 = dma.hbm_to_vmem [thread:$0]  %s189, 2048, %s191, %s180, 64, 64, 4
        $region28: #{tpu_custom_call.1} parent=23 // pred_fallthru
          _
      $region24: #{tpu_custom_call.1} parent=5 // pred_fallthru
        _
      %p197 = scmp.le.s32.totalorder 1, %s21
      %p198 = scmp.lt.s32.totalorder %s21, 5
      %p199 = pnand %p197, %p198
      %p200 = pneg %p199
      // Predicated region
      $region29: #{tpu_custom_call.1} parent=5 // pred_check
        _
      $region30: #{tpu_custom_call.1} parent=5 // pred_check_branch
        %202 = sbr.rel (%p199) target = $region32
      $region31: #{tpu_custom_call.1} parent=5 // pred_region
        %s203 = ssub.s32 %s21, 1
        %s204 = sand.u32 %s34, 1
        %s205 = scalar_lea.sflag [#allocation3], %s204
        %s206 = sand.u32 %s34, 1
        %s207 = smul.addr %s206, 128
        %s208 = scalar_lea.vmem [#allocation2], %s207
        // Predicated region
        $region33: #{tpu_custom_call.1} parent=31 // pred_check
          %p209 = pneg %p47
        $region34: #{tpu_custom_call.1} parent=31 // pred_check_branch
          %211 = sbr.rel (%p209) target = $region36
        $region35: #{tpu_custom_call.1} parent=31 // pred_region
          %212 = dma.done %s205, 2048
        $region36: #{tpu_custom_call.1} parent=31 // pred_fallthru
          _
        // Predicated region
        $region37: #{tpu_custom_call.1} parent=31 // pred_check
          %p213 = pneg %p68
        $region38: #{tpu_custom_call.1} parent=31 // pred_check_branch
          %215 = sbr.rel (%p213) target = $region40
        $region39: #{tpu_custom_call.1} parent=31 // pred_region
          %216 = dma.done [#allocation6], 1024
        $region40: #{tpu_custom_call.1} parent=31 // pred_fallthru
          _
        %s217 = sand.u32 %s34, 1
        %s218 = scalar_lea.sflag [#allocation3], %s217
        %s219 = sand.u32 %s34, 1
        %s220 = smul.addr %s219, 128
        %s221 = scalar_lea.vmem [#allocation2], %s220
        %p222 = pneg %p47
        %p223 = pneg %p44
        %p224 = pneg %p68
        %p225 = pneg %p65
        %p226 = pneg %p89
        %p227 = pneg %p86
        %p228 = pneg %p115
        %p229 = pneg %p112
        %s230 = sand.u32 %s102, 1
        %s231 = scalar_lea.sflag [#allocation4], %s230
        %s232 = sand.u32 %s102, 1
        %s233 = smul.addr %s232, 256
        %s234 = scalar_lea.vmem [#allocation7], %s233
        %p235 = pneg %p141
        %p236 = pneg %p138
        %s237 = sand.u32 %s128, 1
        %s238 = scalar_lea.sflag [#allocation9], %s237
        %s239 = sand.u32 %s128, 1
        %s240 = smul.addr %s239, 2
        %s241 = scalar_lea.vmem [#allocation8], %s240
        %s242 = smul.u32 32, %s26
        %s243 = smul.u32 32, %s26
        %v245 = vld [vmem:[%s208] sm:$0xf]
        %v246 = vld [vmem:[%s208 + $0x4] sm:$0xf]
        %v247 = vld [vmem:[%s208 + $0x8] sm:$0xf]
        %v248 = vld [vmem:[%s208 + $0xc] sm:$0xf]
        %v249 = vld [vmem:[%s208 + $0x10] sm:$0xf]
        %v250 = vld [vmem:[%s208 + $0x14] sm:$0xf]
        %v251 = vld [vmem:[%s208 + $0x18] sm:$0xf]
        %v252 = vld [vmem:[%s208 + $0x1c] sm:$0xf]
        %v253 = vld [vmem:[%s208 + $0x20] sm:$0xf]
        %v254 = vld [vmem:[%s208 + $0x24] sm:$0xf]
        %v255 = vld [vmem:[%s208 + $0x28] sm:$0xf]
        %v256 = vld [vmem:[%s208 + $0x2c] sm:$0xf]
        %v257 = vld [vmem:[%s208 + $0x30] sm:$0xf]
        %v258 = vld [vmem:[%s208 + $0x34] sm:$0xf]
        %v259 = vld [vmem:[%s208 + $0x38] sm:$0xf]
        %v260 = vld [vmem:[%s208 + $0x3c] sm:$0xf]
        %v261 = vld [vmem:[%s208 + $0x40] sm:$0xf]
        %v262 = vld [vmem:[%s208 + $0x44] sm:$0xf]
        %v263 = vld [vmem:[%s208 + $0x48] sm:$0xf]
        %v264 = vld [vmem:[%s208 + $0x4c] sm:$0xf]
        %v265 = vld [vmem:[%s208 + $0x50] sm:$0xf]
        %v266 = vld [vmem:[%s208 + $0x54] sm:$0xf]
        %v267 = vld [vmem:[%s208 + $0x58] sm:$0xf]
        %v268 = vld [vmem:[%s208 + $0x5c] sm:$0xf]
        %v269 = vld [vmem:[%s208 + $0x60] sm:$0xf]
        %v270 = vld [vmem:[%s208 + $0x64] sm:$0xf]
        %v271 = vld [vmem:[%s208 + $0x68] sm:$0xf]
        %v272 = vld [vmem:[%s208 + $0x6c] sm:$0xf]
        %v273 = vld [vmem:[%s208 + $0x70] sm:$0xf]
        %v274 = vld [vmem:[%s208 + $0x74] sm:$0xf]
        %v275 = vld [vmem:[%s208 + $0x78] sm:$0xf]
        %v276 = vld [vmem:[%s208 + $0x7c] sm:$0xf]
        %v277 = vld [vmem:[#allocation5] sm:$0xf]
        %v278 = vld [vmem:[#allocation5 + $0x4] sm:$0xf]
        %v279 = vld [vmem:[#allocation5 + $0x8] sm:$0xf]
        %v280 = vld [vmem:[#allocation5 + $0xc] sm:$0xf]
        %v281 = vld [vmem:[#allocation5 + $0x10] sm:$0xf]
        %v282 = vld [vmem:[#allocation5 + $0x14] sm:$0xf]
        %v283 = vld [vmem:[#allocation5 + $0x18] sm:$0xf]
        %v284 = vld [vmem:[#allocation5 + $0x1c] sm:$0xf]
        %v285 = vld [vmem:[#allocation5 + $0x20] sm:$0xf]
        %v286 = vld [vmem:[#allocation5 + $0x24] sm:$0xf]
        %v287 = vld [vmem:[#allocation5 + $0x28] sm:$0xf]
        %v288 = vld [vmem:[#allocation5 + $0x2c] sm:$0xf]
        %v289 = vld [vmem:[#allocation5 + $0x30] sm:$0xf]
        %v290 = vld [vmem:[#allocation5 + $0x34] sm:$0xf]
        %v291 = vld [vmem:[#allocation5 + $0x38] sm:$0xf]
        %v292 = vld [vmem:[#allocation5 + $0x3c] sm:$0xf]
        %v293 = vld [vmem:[%s2] sm:$0x1]
        %v295 = vlaneseq
        %v296 = vshrl.u32 %v295, 7
        %v297 = vsub.s32 0, %v296
        %v298 = vrot.slane %v293, %v297
        %v332 = vunpack.c.l.b16 %v245
        %v333 = vunpack.c.l.b16 %v246
        %v334 = vunpack.c.l.b16 %v247
        %v335 = vunpack.c.l.b16 %v248
        %v336 = vunpack.c.l.b16 %v249
        %v337 = vunpack.c.l.b16 %v250
        %v338 = vunpack.c.l.b16 %v251
        %v339 = vunpack.c.l.b16 %v252
        %v340 = vunpack.c.l.b16 %v253
        %v341 = vunpack.c.l.b16 %v254
        %v342 = vunpack.c.l.b16 %v255
        %v343 = vunpack.c.l.b16 %v256
        %v344 = vunpack.c.l.b16 %v257
        %v345 = vunpack.c.l.b16 %v258
        %v346 = vunpack.c.l.b16 %v259
        %v347 = vunpack.c.l.b16 %v260
        %v348 = vunpack.c.l.b16 %v261
        %v349 = vunpack.c.l.b16 %v262
        %v350 = vunpack.c.l.b16 %v263
        %v351 = vunpack.c.l.b16 %v264
        %v352 = vunpack.c.l.b16 %v265
        %v353 = vunpack.c.l.b16 %v266
        %v354 = vunpack.c.l.b16 %v267
        %v355 = vunpack.c.l.b16 %v268
        %v356 = vunpack.c.l.b16 %v269
        %v357 = vunpack.c.l.b16 %v270
        %v358 = vunpack.c.l.b16 %v271
        %v359 = vunpack.c.l.b16 %v272
        %v360 = vunpack.c.l.b16 %v273
        %v361 = vunpack.c.l.b16 %v274
        %v362 = vunpack.c.l.b16 %v275
        %v363 = vunpack.c.l.b16 %v276
        %v364 = vpack.c.b16 %v333, %v332
        %v365 = vpack.c.b16 %v335, %v334
        %v366 = vpack.c.b16 %v337, %v336
        %v367 = vpack.c.b16 %v339, %v338
        %v368 = vpack.c.b16 %v341, %v340
        %v369 = vpack.c.b16 %v343, %v342
        %v370 = vpack.c.b16 %v345, %v344
        %v371 = vpack.c.b16 %v347, %v346
        %v372 = vpack.c.b16 %v349, %v348
        %v373 = vpack.c.b16 %v351, %v350
        %v374 = vpack.c.b16 %v353, %v352
        %v375 = vpack.c.b16 %v355, %v354
        %v376 = vpack.c.b16 %v357, %v356
        %v377 = vpack.c.b16 %v359, %v358
        %v378 = vpack.c.b16 %v361, %v360
        %v379 = vpack.c.b16 %v363, %v362
        %v412 = vunpack.c.l.b16 %v277
        %v413 = vunpack.c.l.b16 %v278
        %v414 = vunpack.c.l.b16 %v279
        %v415 = vunpack.c.l.b16 %v280
        %v416 = vunpack.c.l.b16 %v281
        %v417 = vunpack.c.l.b16 %v282
        %v418 = vunpack.c.l.b16 %v283
        %v419 = vunpack.c.l.b16 %v284
        %v420 = vunpack.c.l.b16 %v285
        %v421 = vunpack.c.l.b16 %v286
        %v422 = vunpack.c.l.b16 %v287
        %v423 = vunpack.c.l.b16 %v288
        %v424 = vunpack.c.l.b16 %v289
        %v425 = vunpack.c.l.b16 %v290
        %v426 = vunpack.c.l.b16 %v291
        %v427 = vunpack.c.l.b16 %v292
        %v428 = vpack.c.b16 %v413, %v412
        %v429 = vpack.c.b16 %v415, %v414
        %v430 = vpack.c.b16 %v417, %v416
        %v431 = vpack.c.b16 %v419, %v418
        %v432 = vpack.c.b16 %v421, %v420
        %v433 = vpack.c.b16 %v423, %v422
        %v434 = vpack.c.b16 %v425, %v424
        %v435 = vpack.c.b16 %v427, %v426
        %444 = vmatprep.subr.bf16.mxu0 0
        %445 = vmatpush1.bf16.msra.mxu0 %v435
        %446 = vmatprep.subr.bf16.mxu0 0
        %447 = vmatpush1.bf16.msra.mxu0 %v434
        %448 = vmatprep.subr.bf16.mxu0 0
        %449 = vmatpush1.bf16.msra.mxu0 %v433
        %450 = vmatprep.subr.bf16.mxu0 0
        %451 = vmatpush1.bf16.msra.mxu0 %v432
        %452 = vmatprep.subr.bf16.mxu0 0
        %453 = vmatpush1.bf16.msra.mxu0 %v431
        %454 = vmatprep.subr.bf16.mxu0 0
        %455 = vmatpush1.bf16.msra.mxu0 %v430
        %456 = vmatprep.subr.bf16.mxu0 0
        %457 = vmatpush1.bf16.msra.mxu0 %v429
        %458 = vmatprep.subr.bf16.mxu0 0
        %459 = vmatpush1.bf16.msra.mxu0 %v428
        %460 = vmatprep.subr.bf16.mxu0 0
        %461 = vmatpush2.bf16.msra.mxu0 0
        %462 = vmatprep.subr.bf16.mxu0 0
        %463 = vmatpush2.bf16.msra.mxu0 0
        %464 = vmatprep.subr.bf16.mxu0 0
        %465 = vmatpush2.bf16.msra.mxu0 0
        %466 = vmatprep.subr.bf16.mxu0 0
        %467 = vmatpush2.bf16.msra.mxu0 0
        %468 = vmatprep.subr.bf16.mxu0 0
        %469 = vmatpush2.bf16.msra.mxu0 0
        %470 = vmatprep.subr.bf16.mxu0 0
        %471 = vmatpush2.bf16.msra.mxu0 0
        %472 = vmatprep.subr.bf16.mxu0 0
        %473 = vmatpush2.bf16.msra.mxu0 0
        %474 = vmatprep.subr.bf16.mxu0 0
        %475 = vmatpush2.bf16.msra.mxu0 0
        %476 = vmatprep.mubr.bf16.mxu0 0
        %477 = vmatmul.mubr.bf16.gmra.mxu0 %v364
        %v478 = vpop.f32.mrf.mxu0
        %v479 = vadd.f32 %v298, %v478
        %v480 = vpop.f32.mrf.mxu0
        %v481 = vpop.f32.mrf.mxu0
        %v482 = vadd.f32 %v298, %v481
        %v483 = vpop.f32.mrf.mxu0
        %484 = vmatprep.mubr.bf16.mxu0 0
        %485 = vmatmul.mubr.bf16.gmra.mxu0 %v365
        %v486 = vpop.f32.mrf.mxu0
        %v487 = vadd.f32 %v298, %v486
        %v488 = vpop.f32.mrf.mxu0
        %v489 = vpop.f32.mrf.mxu0
        %v490 = vadd.f32 %v298, %v489
        %v491 = vpop.f32.mrf.mxu0
        %492 = vmatprep.mubr.bf16.mxu0 0
        %493 = vmatmul.mubr.bf16.gmra.mxu0 %v366
        %v494 = vpop.f32.mrf.mxu0
        %v495 = vadd.f32 %v298, %v494
        %v496 = vpop.f32.mrf.mxu0
        %v497 = vpop.f32.mrf.mxu0
        %v498 = vadd.f32 %v298, %v497
        %v499 = vpop.f32.mrf.mxu0
        %500 = vmatprep.mubr.bf16.mxu0 0
        %501 = vmatmul.mubr.bf16.gmra.mxu0 %v367
        %v502 = vpop.f32.mrf.mxu0
        %v503 = vadd.f32 %v298, %v502
        %v504 = vpop.f32.mrf.mxu0
        %v505 = vpop.f32.mrf.mxu0
        %v506 = vadd.f32 %v298, %v505
        %v507 = vpop.f32.mrf.mxu0
        %508 = vmatprep.mubr.bf16.mxu0 0
        %509 = vmatmul.mubr.bf16.gmra.mxu0 %v368
        %v510 = vpop.f32.mrf.mxu0
        %v511 = vadd.f32 %v298, %v510
        %v512 = vpop.f32.mrf.mxu0
        %v513 = vpop.f32.mrf.mxu0
        %v514 = vadd.f32 %v298, %v513
        %v515 = vpop.f32.mrf.mxu0
        %516 = vmatprep.mubr.bf16.mxu0 0
        %517 = vmatmul.mubr.bf16.gmra.mxu0 %v369
        %v518 = vpop.f32.mrf.mxu0
        %v519 = vadd.f32 %v298, %v518
        %v520 = vpop.f32.mrf.mxu0
        %v521 = vpop.f32.mrf.mxu0
        %v522 = vadd.f32 %v298, %v521
        %v523 = vpop.f32.mrf.mxu0
        %524 = vmatprep.mubr.bf16.mxu0 0
        %525 = vmatmul.mubr.bf16.gmra.mxu0 %v370
        %v526 = vpop.f32.mrf.mxu0
        %v527 = vadd.f32 %v298, %v526
        %v528 = vpop.f32.mrf.mxu0
        %v529 = vpop.f32.mrf.mxu0
        %v530 = vadd.f32 %v298, %v529
        %v531 = vpop.f32.mrf.mxu0
        %532 = vmatprep.mubr.bf16.mxu0 0
        %533 = vmatmul.mubr.bf16.gmra.mxu0 %v371
        %v534 = vpop.f32.mrf.mxu0
        %v535 = vadd.f32 %v298, %v534
        %v536 = vpop.f32.mrf.mxu0
        %v537 = vpop.f32.mrf.mxu0
        %v538 = vadd.f32 %v298, %v537
        %v539 = vpop.f32.mrf.mxu0
        %540 = vmatprep.mubr.bf16.mxu0 0
        %541 = vmatmul.mubr.bf16.gmra.mxu0 %v372
        %v542 = vpop.f32.mrf.mxu0
        %v543 = vadd.f32 %v298, %v542
        %v544 = vpop.f32.mrf.mxu0
        %v545 = vpop.f32.mrf.mxu0
        %v546 = vadd.f32 %v298, %v545
        %v547 = vpop.f32.mrf.mxu0
        %548 = vmatprep.mubr.bf16.mxu0 0
        %549 = vmatmul.mubr.bf16.gmra.mxu0 %v373
        %v550 = vpop.f32.mrf.mxu0
        %v551 = vadd.f32 %v298, %v550
        %v552 = vpop.f32.mrf.mxu0
        %v553 = vpop.f32.mrf.mxu0
        %v554 = vadd.f32 %v298, %v553
        %v555 = vpop.f32.mrf.mxu0
        %556 = vmatprep.mubr.bf16.mxu0 0
        %557 = vmatmul.mubr.bf16.gmra.mxu0 %v374
        %v558 = vpop.f32.mrf.mxu0
        %v559 = vadd.f32 %v298, %v558
        %v560 = vpop.f32.mrf.mxu0
        %v561 = vpop.f32.mrf.mxu0
        %v562 = vadd.f32 %v298, %v561
        %v563 = vpop.f32.mrf.mxu0
        %564 = vmatprep.mubr.bf16.mxu0 0
        %565 = vmatmul.mubr.bf16.gmra.mxu0 %v375
        %v566 = vpop.f32.mrf.mxu0
        %v567 = vadd.f32 %v298, %v566
        %v568 = vpop.f32.mrf.mxu0
        %v569 = vpop.f32.mrf.mxu0
        %v570 = vadd.f32 %v298, %v569
        %v571 = vpop.f32.mrf.mxu0
        %572 = vmatprep.mubr.bf16.mxu0 0
        %573 = vmatmul.mubr.bf16.gmra.mxu0 %v376
        %v574 = vpop.f32.mrf.mxu0
        %v575 = vadd.f32 %v298, %v574
        %v576 = vpop.f32.mrf.mxu0
        %v577 = vpop.f32.mrf.mxu0
        %v578 = vadd.f32 %v298, %v577
        %v579 = vpop.f32.mrf.mxu0
        %580 = vmatprep.mubr.bf16.mxu0 0
        %581 = vmatmul.mubr.bf16.gmra.mxu0 %v377
        %v582 = vpop.f32.mrf.mxu0
        %v583 = vadd.f32 %v298, %v582
        %v584 = vpop.f32.mrf.mxu0
        %v585 = vpop.f32.mrf.mxu0
        %v586 = vadd.f32 %v298, %v585
        %v587 = vpop.f32.mrf.mxu0
        %588 = vmatprep.mubr.bf16.mxu0 0
        %589 = vmatmul.mubr.bf16.gmra.mxu0 %v378
        %v590 = vpop.f32.mrf.mxu0
        %v591 = vadd.f32 %v298, %v590
        %v592 = vpop.f32.mrf.mxu0
        %v593 = vpop.f32.mrf.mxu0
        %v594 = vadd.f32 %v298, %v593
        %v595 = vpop.f32.mrf.mxu0
        %596 = vmatprep.mubr.bf16.mxu0 0
        %597 = vmatmul.mubr.bf16.gmra.mxu0 %v379
        %v598 = vpop.f32.mrf.mxu0
        %v599 = vadd.f32 %v298, %v598
        %v600 = vpop.f32.mrf.mxu0
        %v601 = vpop.f32.mrf.mxu0
        %v602 = vadd.f32 %v298, %v601
        %v603 = vpop.f32.mrf.mxu0
        %604 = vdwg.mxu0
        %605 = vst [vmem:[%s234] sm:$0xff] %v479
        %606 = vst [vmem:[%s234 + $0x8] sm:$0xff] %v482
        %607 = vst [vmem:[%s234 + $0x10] sm:$0xff] %v487
        %608 = vst [vmem:[%s234 + $0x18] sm:$0xff] %v490
        %609 = vst [vmem:[%s234 + $0x20] sm:$0xff] %v495
        %610 = vst [vmem:[%s234 + $0x28] sm:$0xff] %v498
        %611 = vst [vmem:[%s234 + $0x30] sm:$0xff] %v503
        %612 = vst [vmem:[%s234 + $0x38] sm:$0xff] %v506
        %613 = vst [vmem:[%s234 + $0x40] sm:$0xff] %v511
        %614 = vst [vmem:[%s234 + $0x48] sm:$0xff] %v514
        %615 = vst [vmem:[%s234 + $0x50] sm:$0xff] %v519
        %616 = vst [vmem:[%s234 + $0x58] sm:$0xff] %v522
        %617 = vst [vmem:[%s234 + $0x60] sm:$0xff] %v527
        %618 = vst [vmem:[%s234 + $0x68] sm:$0xff] %v530
        %619 = vst [vmem:[%s234 + $0x70] sm:$0xff] %v535
        %620 = vst [vmem:[%s234 + $0x78] sm:$0xff] %v538
        %621 = vst [vmem:[%s234 + $0x80] sm:$0xff] %v543
        %622 = vst [vmem:[%s234 + $0x88] sm:$0xff] %v546
        %623 = vst [vmem:[%s234 + $0x90] sm:$0xff] %v551
        %624 = vst [vmem:[%s234 + $0x98] sm:$0xff] %v554
        %625 = vst [vmem:[%s234 + $0xa0] sm:$0xff] %v559
        %626 = vst [vmem:[%s234 + $0xa8] sm:$0xff] %v562
        %627 = vst [vmem:[%s234 + $0xb0] sm:$0xff] %v567
        %628 = vst [vmem:[%s234 + $0xb8] sm:$0xff] %v570
        %629 = vst [vmem:[%s234 + $0xc0] sm:$0xff] %v575
        %630 = vst [vmem:[%s234 + $0xc8] sm:$0xff] %v578
        %631 = vst [vmem:[%s234 + $0xd0] sm:$0xff] %v583
        %632 = vst [vmem:[%s234 + $0xd8] sm:$0xff] %v586
        %633 = vst [vmem:[%s234 + $0xe0] sm:$0xff] %v591
        %634 = vst [vmem:[%s234 + $0xe8] sm:$0xff] %v594
        %635 = vst [vmem:[%s234 + $0xf0] sm:$0xff] %v599
        %636 = vst [vmem:[%s234 + $0xf8] sm:$0xff] %v602
        %v637 = vadd.f32 %v479, %v482
        %v638 = vadd.f32 %v637, %v487
        %v639 = vadd.f32 %v638, %v490
        %v640 = vadd.f32 %v639, %v495
        %v641 = vadd.f32 %v640, %v498
        %v642 = vadd.f32 %v641, %v503
        %v643 = vadd.f32 %v642, %v506
        %v644 = vadd.f32 %v643, %v511
        %v645 = vadd.f32 %v644, %v514
        %v646 = vadd.f32 %v645, %v519
        %v647 = vadd.f32 %v646, %v522
        %v648 = vadd.f32 %v647, %v527
        %v649 = vadd.f32 %v648, %v530
        %v650 = vadd.f32 %v649, %v535
        %v651 = vadd.f32 %v650, %v538
        %v652 = vadd.f32 %v651, %v543
        %v653 = vadd.f32 %v652, %v546
        %v654 = vadd.f32 %v653, %v551
        %v655 = vadd.f32 %v654, %v554
        %v656 = vadd.f32 %v655, %v559
        %v657 = vadd.f32 %v656, %v562
        %v658 = vadd.f32 %v657, %v567
        %v659 = vadd.f32 %v658, %v570
        %v660 = vadd.f32 %v659, %v575
        %v661 = vadd.f32 %v660, %v578
        %v662 = vadd.f32 %v661, %v583
        %v663 = vadd.f32 %v662, %v586
        %v664 = vadd.f32 %v663, %v591
        %v665 = vadd.f32 %v664, %v594
        %v666 = vadd.f32 %v665, %v599
        %v667 = vadd.f32 %v666, %v602
        %v668 = vrot.slane %v667, 4
        %v669 = vadd.f32 %v667, %v668
        %v670 = vrot.slane %v669, 2
        %v671 = vadd.f32 %v669, %v670
        %v672 = vrot.slane %v671, 1
        %v673 = vadd.f32 %v671, %v672
        %v674 = vmul.f32 %v479, %v479
        %v675 = vmul.f32 %v482, %v482
        %v676 = vmul.f32 %v487, %v487
        %v677 = vmul.f32 %v490, %v490
        %v678 = vmul.f32 %v495, %v495
        %v679 = vmul.f32 %v498, %v498
        %v680 = vmul.f32 %v503, %v503
        %v681 = vmul.f32 %v506, %v506
        %v682 = vmul.f32 %v511, %v511
        %v683 = vmul.f32 %v514, %v514
        %v684 = vmul.f32 %v519, %v519
        %v685 = vmul.f32 %v522, %v522
        %v686 = vmul.f32 %v527, %v527
        %v687 = vmul.f32 %v530, %v530
        %v688 = vmul.f32 %v535, %v535
        %v689 = vmul.f32 %v538, %v538
        %v690 = vmul.f32 %v543, %v543
        %v691 = vmul.f32 %v546, %v546
        %v692 = vmul.f32 %v551, %v551
        %v693 = vmul.f32 %v554, %v554
        %v694 = vmul.f32 %v559, %v559
        %v695 = vmul.f32 %v562, %v562
        %v696 = vmul.f32 %v567, %v567
        %v697 = vmul.f32 %v570, %v570
        %v698 = vmul.f32 %v575, %v575
        %v699 = vmul.f32 %v578, %v578
        %v700 = vmul.f32 %v583, %v583
        %v701 = vmul.f32 %v586, %v586
        %v702 = vmul.f32 %v591, %v591
        %v703 = vmul.f32 %v594, %v594
        %v704 = vmul.f32 %v599, %v599
        %v705 = vmul.f32 %v602, %v602
        %v706 = vadd.f32 %v674, %v675
        %v707 = vadd.f32 %v706, %v676
        %v708 = vadd.f32 %v707, %v677
        %v709 = vadd.f32 %v708, %v678
        %v710 = vadd.f32 %v709, %v679
        %v711 = vadd.f32 %v710, %v680
        %v712 = vadd.f32 %v711, %v681
        %v713 = vadd.f32 %v712, %v682
        %v714 = vadd.f32 %v713, %v683
        %v715 = vadd.f32 %v714, %v684
        %v716 = vadd.f32 %v715, %v685
        %v717 = vadd.f32 %v716, %v686
        %v718 = vadd.f32 %v717, %v687
        %v719 = vadd.f32 %v718, %v688
        %v720 = vadd.f32 %v719, %v689
        %v721 = vadd.f32 %v720, %v690
        %v722 = vadd.f32 %v721, %v691
        %v723 = vadd.f32 %v722, %v692
        %v724 = vadd.f32 %v723, %v693
        %v725 = vadd.f32 %v724, %v694
        %v726 = vadd.f32 %v725, %v695
        %v727 = vadd.f32 %v726, %v696
        %v728 = vadd.f32 %v727, %v697
        %v729 = vadd.f32 %v728, %v698
        %v730 = vadd.f32 %v729, %v699
        %v731 = vadd.f32 %v730, %v700
        %v732 = vadd.f32 %v731, %v701
        %v733 = vadd.f32 %v732, %v702
        %v734 = vadd.f32 %v733, %v703
        %v735 = vadd.f32 %v734, %v704
        %v736 = vadd.f32 %v735, %v705
        %v737 = vrot.slane %v736, 4
        %v738 = vadd.f32 %v736, %v737
        %v739 = vrot.slane %v738, 2
        %v740 = vadd.f32 %v738, %v739
        %v741 = vrot.slane %v740, 1
        %v742 = vadd.f32 %v740, %v741
        %vm743 = vcmask 1040384
        %v744 = vsel %vm743, %v673, %v742
        %745 = vst [vmem:[%s241] sm:$0x3] %v744
        %s746 = sand.u32 %s102, 1
        %s747 = scalar_lea.sflag [#allocation4], %s746
        %s748 = sand.u32 %s102, 1
        %s749 = smul.addr %s748, 256
        %s750 = scalar_lea.vmem [#allocation7], %s749
        %s751 = sand.u32 %s128, 1
        %s752 = scalar_lea.sflag [#allocation9], %s751
        %s753 = sand.u32 %s128, 1
        %s754 = smul.addr %s753, 2
        %s755 = scalar_lea.vmem [#allocation8], %s754
        // Predicated region
        $region41: #{tpu_custom_call.1} parent=31 // pred_check
          %p756 = pneg %p112
        $region42: #{tpu_custom_call.1} parent=31 // pred_check_branch
          %758 = sbr.rel (%p756) target = $region44
        $region43: #{tpu_custom_call.1} parent=31 // pred_region
          %s759 = smul.u32 32, %s26
          %s761 = ssub.s32 4096, 4096
          %762 = vsyncadd %s747, %s761
          %s763 = smul.addr %s759, 128
          %s764 = scalar_lea.hbm %s3, %s763
          %s765 = sshll.u32 %s750, 4
          %s766 = int_to_ptr.vmem [resolvable:$true] %s765
          %771 = dma.vmem_to_hbm [thread:$0]  %s766, 4096, %s764, %s747, 128, 128, 8
        $region44: #{tpu_custom_call.1} parent=31 // pred_fallthru
          _
        // Predicated region
        $region45: #{tpu_custom_call.1} parent=31 // pred_check
          %p772 = pneg %p138
        $region46: #{tpu_custom_call.1} parent=31 // pred_check_branch
          %774 = sbr.rel (%p772) target = $region48
        $region47: #{tpu_custom_call.1} parent=31 // pred_region
          %s776 = ssub.s32 32, 32
          %777 = vsyncadd %s752, %s776
          %s778 = smul.addr %s26, 32
          %s779 = scalar_lea.hbm %s4, %s778
          %s781 = sshll.u32 %s755, 4
          %s782 = int_to_ptr.vmem [resolvable:$true] %s781
          %784 = dma.vmem_to_hbm [thread:$0]  %s782, 32, %s779, %s752
        $region48: #{tpu_custom_call.1} parent=31 // pred_fallthru
          _
      $region32: #{tpu_custom_call.1} parent=5 // pred_fallthru
        _
      %p785 = scmp.le.s32.totalorder 2, %s21
      // Predicated region
      $region49: #{tpu_custom_call.1} parent=5 // pred_check
        %p786 = pneg %p785
      $region50: #{tpu_custom_call.1} parent=5 // pred_check_branch
        %788 = sbr.rel (%p786) target = $region52
      $region51: #{tpu_custom_call.1} parent=5 // pred_region
        %s789 = ssub.s32 %s21, 2
        // Predicated region
        $region53: #{tpu_custom_call.1} parent=51 // pred_check
          %p790 = pneg %p118
        $region54: #{tpu_custom_call.1} parent=51 // pred_check_branch
          %792 = sbr.rel (%p790) target = $region56
        $region55: #{tpu_custom_call.1} parent=51 // pred_region
          %s793 = sand.u32 %s103, 1
          %s794 = scalar_lea.sflag [#allocation4], %s793
          %s795 = sand.u32 %s103, 1
          %s796 = smul.addr %s795, 256
          %s797 = scalar_lea.vmem [#allocation7], %s796
          %798 = dma.done %s794, 4096
        $region56: #{tpu_custom_call.1} parent=51 // pred_fallthru
          _
        // Predicated region
        $region57: #{tpu_custom_call.1} parent=51 // pred_check
          %p799 = pneg %p144
        $region58: #{tpu_custom_call.1} parent=51 // pred_check_branch
          %801 = sbr.rel (%p799) target = $region60
        $region59: #{tpu_custom_call.1} parent=51 // pred_region
          %s802 = sand.u32 %s129, 1
          %s803 = scalar_lea.sflag [#allocation9], %s802
          %s804 = sand.u32 %s129, 1
          %s805 = smul.addr %s804, 2
          %s806 = scalar_lea.vmem [#allocation8], %s805
          %807 = dma.done %s803, 32
        $region60: #{tpu_custom_call.1} parent=51 // pred_fallthru
          _
      $region52: #{tpu_custom_call.1} parent=5 // pred_fallthru
        _
    $region6: #{tpu_custom_call.1} parent=1 // loop_footer
      %s25 = sadd.s32 1, %s21
    $region7: #{tpu_custom_call.1} parent=1 // loop_footer_branch
      %20 = sbr.rel target = $region3
    $region8: #{tpu_custom_call.1} parent=1 // loop_exit
      _
    %808 = vsyncpa [#allocation3], 1
    %s809 = scalar_lea.sflag [#allocation3], 1
    %810 = vsyncpa %s809, 1
    %811 = vsyncpa [#allocation6], 1
    %812 = vsyncpa [#allocation4], 1
    %s813 = scalar_lea.sflag [#allocation4], 1
    %814 = vsyncpa %s813, 1
    %815 = vsyncpa [#allocation9], 1
    %s816 = scalar_lea.sflag [#allocation9], 1
    %817 = vsyncpa %s816, 1

</llo_original>
